<compile_context>
chip_gen: v7x
topology: tpu7x:2x2x1
jax: 0.10.0
libtpu: 0.0.40
codegen_flags: <defaults>
</compile_context>

<pallas_src>
import functools
import math

import jax
import jax.numpy as jnp
from jax.experimental import pallas as pl
from jax.experimental.pallas import tpu as pltpu


def _round_up(v, m):
    return (v + m - 1) // m * m


def _vmem_capacity_bytes():
    """Physical VMEM of the current generation (fallback: conservative 64 MiB)."""
    try:
        info = pltpu.get_tpu_info()
        cap = getattr(info, "vmem_capacity_bytes", None)
        if cap:
            return int(cap)
    except Exception:
        pass
    return 64 * 2 ** 20


# ---------------------------------------------------------------------------
# Fused single-pass kernel: per batch, x resident in VMEM, read once.
# ---------------------------------------------------------------------------
def _fused_kernel(x_ref, wvu_ref, bv_ref, bu_ref, ww_ref, bw_ref,
                  m_ref, a_ref, *, dp, n_valid, mm_dtype):
    xb = x_ref[0]                                                   # (L, N) f32

    # Single stacked projection on the MXU: (2Dp, L) @ (L, N) -> (2Dp, N), f32 acc.
    g = jnp.dot(wvu_ref[...], xb.astype(mm_dtype),
                preferred_element_type=jnp.float32)

    # Sublane-aligned split (Dp multiple of 8); biases applied on the halves only.
    gate = (jnp.tanh(g[:dp, :] + bv_ref[...])
            * jax.nn.sigmoid(g[dp:, :] + bu_ref[...]))              # (Dp, N)

    # K == 1 logit: VPU broadcast-mul + XLU sublane reduce (no 1-row MXU pass).
    logit = jnp.sum(ww_ref[...] * gate, axis=0, keepdims=True) + bw_ref[...]   # (1, N)

    # Defensive select against undefined pad lanes (never an additive mask).
    lane = jax.lax.broadcasted_iota(jnp.int32, logit.shape, 1)
    logit = jnp.where(lane < n_valid, logit, -1e30)

    # Exact softmax over the instance axis.
    row = logit - jnp.max(logit, axis=-1, keepdims=True)
    e = jnp.exp(row)
    a = e / jnp.sum(e, axis=-1, keepdims=True)                      # (1, N)

    a_ref[0] = a.astype(a_ref.dtype)
    m_ref[0] = (xb * a).astype(m_ref.dtype)


# ---------------------------------------------------------------------------
# Tiled path, kernel 1: attention logits per (batch, instance-tile).
# Output buffer is tile-padded; pad lanes are written as -1e30 (fully defined).
# ---------------------------------------------------------------------------
def _logits_kernel(x_ref, wvu_ref, bv_ref, bu_ref, ww_ref, bw_ref,
                   logits_ref, *, dp, n_valid, mm_dtype):
    xb = x_ref[0]                                                   # (L, TN)
    g = jnp.dot(wvu_ref[...], xb.astype(mm_dtype),
                preferred_element_type=jnp.float32)                 # (2Dp, TN)
    gate = (jnp.tanh(g[:dp, :] + bv_ref[...])
            * jax.nn.sigmoid(g[dp:, :] + bu_ref[...]))              # (Dp, TN)
    logit = jnp.sum(ww_ref[...] * gate, axis=0, keepdims=True) + bw_ref[...]   # (1, TN)

    # Global instance index of every lane in this tile; pad instances -> -1e30.
    tn = logit.shape[-1]
    lane = jax.lax.broadcasted_iota(jnp.int32, logit.shape, 1) + pl.program_id(1) * tn
    logits_ref[0] = jnp.where(lane < n_valid, logit, -1e30).astype(logits_ref.dtype)


# ---------------------------------------------------------------------------
# Tiled path, kernel 2: softmax folded into the weighted kernel.
#   row_ref : full (K, N_full) logit row for this batch (DMA'd once per batch).
#   tile_ref: the (K, TN) slice of the same logits matching this x tile.
# ---------------------------------------------------------------------------
def _softmax_weighted_kernel(x_ref, row_ref, tile_ref, m_ref, a_ref):
    row = row_ref[0]                                                # (K, N_full), defined everywhere
    mx = jnp.max(row, axis=-1, keepdims=True)
    s = jnp.sum(jnp.exp(row - mx), axis=-1, keepdims=True)
    a = jnp.exp(tile_ref[0] - mx) / s                               # (K, TN), exact division
    a_ref[0] = a.astype(a_ref.dtype)
    m_ref[0] = (x_ref[0] * a).astype(m_ref.dtype)


def gated_attention(x, wv, bv, wu, bu, ww, bw, *, tile_n=1024, mm_dtype=None, fuse=None):
    """x: (B, L, N) float32. Weights in torch nn.Linear layout: wv,wu (D,L), ww (K,D).

    mm_dtype: dtype for the projection matmul operands only (e.g. jnp.bfloat16 on
              v5e/v6e/v7x for full MXU rate); accumulation and all elementwise math
              stay f32.  Default: x.dtype (keeps 1e-5 parity with the reference).
    fuse:     None = auto (gated on queried VMEM capacity), True/False = force.
    """
    B, L, N = x.shape
    D = wv.shape[0]
    K = ww.shape[0]
    # torch's `x * A` broadcast (L vs K) only makes sense for K == 1 (standard MIL usage).
    assert K == 1, "GatedAttention kernel requires K == 1 (torch broadcast of x * A)"
    assert tile_n % 128 == 0, "tile_n must be a multiple of 128 (lane width)"

    mm_dtype = x.dtype if mm_dtype is None else jnp.dtype(mm_dtype)
    wbytes = jnp.dtype(mm_dtype).itemsize
    f32 = 4

    # --- sublane-aligned stacked projection weight (pad D up to a multiple of 8) ----
    dp = _round_up(D, 8)
    pad_d = dp - D
    if pad_d:
        wv_p = jnp.pad(wv, ((0, pad_d), (0, 0)))
        wu_p = jnp.pad(wu, ((0, pad_d), (0, 0)))
        bv_p = jnp.pad(bv, (0, pad_d))
        bu_p = jnp.pad(bu, (0, pad_d))
        ww_p = jnp.pad(ww.reshape(-1), (0, pad_d))       # zero rows contribute 0 to the logit
    else:
        wv_p, wu_p, bv_p, bu_p, ww_p = wv, wu, bv, bu, ww.reshape(-1)

    w_vu = jnp.concatenate([wv_p, wu_p], axis=0).astype(mm_dtype)   # (2Dp, L), pre-cast once
    bv_col = bv_p.reshape(dp, 1).astype(jnp.float32)
    bu_col = bu_p.reshape(dp, 1).astype(jnp.float32)
    ww_col = ww_p.reshape(dp, 1).astype(jnp.float32)
    bw_s = bw.reshape(1, 1).astype(jnp.float32)

    # --- VMEM budgeting (per generation) --------------------------------------------
    vmem_cap = _vmem_capacity_bytes()
    n_lanes = _round_up(N, 128)
    l_rows = _round_up(L, 8)
    w_res = 2 * (2 * dp * L * wbytes) + 2 * (3 * dp + 1) * 128 * f32   # resident weight buffers

    fuse_bytes = (2 * 2 * l_rows * n_lanes * f32          # x in + M out (double-buffered)
                  + 2 * K * n_lanes * f32                 # A out
                  + (3 * dp + 4 * K) * n_lanes * f32      # live intermediates (g, gate, logit/exp)
                  + w_res)
    if fuse is None:
        fuse = fuse_bytes <= vmem_cap // 2

    # =================================================================================
    # Fused single-pass path: grid (B,), x read from HBM exactly once.
    # =================================================================================
    if fuse:
        vmem_limit = int(min(max(fuse_bytes + (4 << 20), 16 << 20), int(vmem_cap * 0.9)))
        m_out, a_out = pl.pallas_call(
            functools.partial(_fused_kernel, dp=dp, n_valid=N, mm_dtype=mm_dtype),
            out_shape=(jax.ShapeDtypeStruct((B, L, N), x.dtype),
                       jax.ShapeDtypeStruct((B, K, N), x.dtype)),
            grid_spec=pltpu.PrefetchScalarGridSpec(
                num_scalar_prefetch=0,
                grid=(B,),
                in_specs=[
                    pl.BlockSpec((1, L, N), lambda b: (b, 0, 0)),      # x slab (full N)
                    pl.BlockSpec((2 * dp, L), lambda b: (0, 0)),       # stacked Wv|Wu (pre-cast)
                    pl.BlockSpec((dp, 1), lambda b: (0, 0)),           # bv
                    pl.BlockSpec((dp, 1), lambda b: (0, 0)),           # bu
                    pl.BlockSpec((dp, 1), lambda b: (0, 0)),           # Ww column
                    pl.BlockSpec((1, 1), lambda b: (0, 0)),            # bw
                ],
                out_specs=[
                    pl.BlockSpec((1, L, N), lambda b: (b, 0, 0)),
                    pl.BlockSpec((1, K, N), lambda b: (b, 0, 0)),
                ],
            ),
            compiler_params=pltpu.CompilerParams(
                dimension_semantics=("parallel",),
                vmem_limit_bytes=vmem_limit,
            ),
        )(x, w_vu, bv_col, bu_col, ww_col, bw_s)
        return m_out, a_out

    # =================================================================================
    # Tiled 2-pass path (large slabs / small-VMEM generations).
    # =================================================================================
    tn = min(tile_n, n_lanes)

    def _step_bytes(t):
        k1 = (2 * (l_rows * t + K * t) * f32 + (3 * dp + 2 * K) * t * f32 + w_res)
        k3 = (2 * (2 * l_rows * t + 2 * K * t) * f32
              + 2 * K * _round_up(N, t) * f32            # full logit row (double-buffered)
              + 4 * K * max(t, n_lanes) * f32)           # softmax temporaries
        return max(k1, k3)

    while tn > 128 and _step_bytes(tn) > vmem_cap // 2:
        tn = max(128, (tn // 2) // 128 * 128)

    n_full = _round_up(N, tn)            # tile-padded logit row (tiny; K == 1)
    n_tiles = n_full // tn
    vmem_limit = int(min(max(_step_bytes(tn) + (4 << 20), 16 << 20), int(vmem_cap * 0.9)))

    # Both grid axes are fully independent -> megacore may split either on v7x.
    params = pltpu.CompilerParams(
        dimension_semantics=("parallel", "parallel"),
        vmem_limit_bytes=vmem_limit,
    )

    # ---- 1) attention logits (fully-defined, tile-padded buffer) ---------------------
    logits = pl.pallas_call(
        functools.partial(_logits_kernel, dp=dp, n_valid=N, mm_dtype=mm_dtype),
        out_shape=jax.ShapeDtypeStruct((B, K, n_full), jnp.float32),
        grid_spec=pltpu.PrefetchScalarGridSpec(
            num_scalar_prefetch=0,
            grid=(B, n_tiles),
            in_specs=[
                pl.BlockSpec((1, L, tn), lambda b, n: (b, 0, n)),      # x tile
                pl.BlockSpec((2 * dp, L), lambda b, n: (0, 0)),
                pl.BlockSpec((dp, 1), lambda b, n: (0, 0)),
                pl.BlockSpec((dp, 1), lambda b, n: (0, 0)),
                pl.BlockSpec((dp, 1), lambda b, n: (0, 0)),
                pl.BlockSpec((1, 1), lambda b, n: (0, 0)),
            ],
            out_specs=pl.BlockSpec((1, K, tn), lambda b, n: (b, 0, n)),
        ),
        compiler_params=params,
    )(x, w_vu, bv_col, bu_col, ww_col, bw_s)

    # ---- 2) softmax + M = x * A, written directly into (B, L, N) / (B, K, N) ---------
    m_out, a_out = pl.pallas_call(
        _softmax_weighted_kernel,
        out_shape=(jax.ShapeDtypeStruct((B, L, N), x.dtype),
                   jax.ShapeDtypeStruct((B, K, N), x.dtype)),
        grid_spec=pltpu.PrefetchScalarGridSpec(
            num_scalar_prefetch=0,
            grid=(B, n_tiles),
            in_specs=[
                pl.BlockSpec((1, L, tn), lambda b, n: (b, 0, n)),      # x tile
                pl.BlockSpec((1, K, n_full), lambda b, n: (b, 0, 0)),  # full logit row (once per batch)
                pl.BlockSpec((1, K, tn), lambda b, n: (b, 0, n)),      # logit tile
            ],
            out_specs=[
                pl.BlockSpec((1, L, tn), lambda b, n: (b, 0, n)),      # M (partial last block masked)
                pl.BlockSpec((1, K, tn), lambda b, n: (b, 0, n)),      # A
            ],
        ),
        compiler_params=params,
    )(x, logits, logits)

    return m_out, a_out


def _xavier_normal(key, shape):
    fan_out, fan_in = shape
    std = math.sqrt(2.0 / (fan_in + fan_out))
    return std * jax.random.normal(key, shape, dtype=jnp.float32)


def _reference(x, wv, bv, wu, bu, ww, bw):
    H = jnp.swapaxes(x, 1, 2)                       # (B, N, L)
    A_V = jnp.tanh(H @ wv.T + bv)                   # (B, N, D)
    A_U = jax.nn.sigmoid(H @ wu.T + bu)             # (B, N, D)
    A = (A_V * A_U) @ ww.T + bw                     # (B, N, K)
    A = jnp.swapaxes(A, 1, 2)                       # (B, K, N)
    A = jax.nn.softmax(A, axis=2)
    M = x * A
    return M, A


if __name__ == "__main__":
    # Small shapes consistent with the module: x is (B, L, N).
    B, L, N = 2, 32, 16
    D, K = 32, 1

    key = jax.random.PRNGKey(0)
    kx, kx2, kv, ku, kw = jax.random.split(key, 5)

    wv = _xavier_normal(kv, (D, L))
    bv = jnp.zeros((D,), dtype=jnp.float32)
    wu = _xavier_normal(ku, (D, L))
    bu = jnp.zeros((D,), dtype=jnp.float32)
    ww = _xavier_normal(kw, (K, D))
    bw = jnp.zeros((K,), dtype=jnp.float32)
    # TODO(synk): the torch module also defines `classifier`, but it is unused in forward().

    # --- Path 1: fused single-pass kernel (auto-selected for small slabs) ---
    x = jax.random.normal(kx, (B, L, N), dtype=jnp.float32)
    M, A = gated_attention(x, wv, bv, wu, bu, ww, bw)
    jax.block_until_ready((M, A))
    M_ref, A_ref = _reference(x, wv, bv, wu, bu, ww, bw)
    assert M.shape == M_ref.shape and A.shape == A_ref.shape
    assert jnp.allclose(M, M_ref, atol=1e-5, rtol=1e-5), "fused M mismatch"
    assert jnp.allclose(A, A_ref, atol=1e-5, rtol=1e-5), "fused A mismatch"

    # --- Path 2: tiled 2-pass kernels, ragged last instance tile (forced) ---
    N2 = 300
    x2 = jax.random.normal(kx2, (B, L, N2), dtype=jnp.float32)
    M2, A2 = gated_attention(x2, wv, bv, wu, bu, ww, bw, tile_n=128, fuse=False)
    jax.block_until_ready((M2, A2))
    M2_ref, A2_ref = _reference(x2, wv, bv, wu, bu, ww, bw)
    assert M2.shape == M2_ref.shape and A2.shape == A2_ref.shape
    assert jnp.allclose(M2, M2_ref, atol=1e-5, rtol=1e-5), "tiled M mismatch"
    assert jnp.allclose(A2, A2_ref, atol=1e-5, rtol=1e-5), "tiled A mismatch"

    print("KERNEL_OK")
</pallas_src>

<mosaic_0001>
module attributes {stable_mosaic.version = 11 : i64} {
  func.func @_fused_kernel(%arg0: i32, %arg1: memref<1x32x16xf32, #tpu.memory_space<vmem>>, %arg2: memref<64x32xf32, #tpu.memory_space<vmem>>, %arg3: memref<32x1xf32, #tpu.memory_space<vmem>>, %arg4: memref<32x1xf32, #tpu.memory_space<vmem>>, %arg5: memref<32x1xf32, #tpu.memory_space<vmem>>, %arg6: memref<1x1xf32, #tpu.memory_space<vmem>>, %arg7: memref<1x32x16xf32, #tpu.memory_space<vmem>>, %arg8: memref<1x1x16xf32, #tpu.memory_space<vmem>>) attributes {dimension_semantics = [#tpu.dimension_semantics<parallel>], iteration_bounds = array<i64: 2>, scalar_prefetch = 0 : i64, scratch_operands = 0 : i64, tpu.core_type = #tpu.core_type<tc>, window_params = [{transform_indices = @transform_0, window_bounds = array<i64: 1, 32, 16>}, {pipeline_mode = #tpu.pipeline_mode<synchronous>, transform_indices = @transform_1, window_bounds = array<i64: 64, 32>}, {pipeline_mode = #tpu.pipeline_mode<synchronous>, transform_indices = @transform_2, window_bounds = array<i64: 32, 1>}, {pipeline_mode = #tpu.pipeline_mode<synchronous>, transform_indices = @transform_3, window_bounds = array<i64: 32, 1>}, {pipeline_mode = #tpu.pipeline_mode<synchronous>, transform_indices = @transform_4, window_bounds = array<i64: 32, 1>}, {pipeline_mode = #tpu.pipeline_mode<synchronous>, transform_indices = @transform_5, window_bounds = array<i64: 1, 1>}, {transform_indices = @transform_6, window_bounds = array<i64: 1, 32, 16>}, {transform_indices = @transform_7, window_bounds = array<i64: 1, 1, 16>}]} {
    %c0 = arith.constant 0 : index
    %c0_0 = arith.constant 0 : index
    %c0_1 = arith.constant 0 : index
    %0 = vector.load %arg1[%c0, %c0_0, %c0_1] : memref<1x32x16xf32, #tpu.memory_space<vmem>>, vector<1x32x16xf32>
    %1 = vector.shape_cast %0 : vector<1x32x16xf32> to vector<32x16xf32>
    %c0_2 = arith.constant 0 : index
    %c0_3 = arith.constant 0 : index
    %2 = vector.load %arg2[%c0_2, %c0_3] : memref<64x32xf32, #tpu.memory_space<vmem>>, vector<64x32xf32>
    %cst = arith.constant dense<0.000000e+00> : vector<64x16xf32>
    %3 = tpu.matmul %2, %1, %cst {dimension_numbers = #tpu.dot_dimension_numbers<[1], [0], [0], [1], [0, 0, 1, 1], [], []>} : vector<64x32xf32>, vector<32x16xf32>, vector<64x16xf32> -> vector<64x16xf32>
    %4 = vector.extract_strided_slice %3 {offsets = [0, 0], sizes = [32, 16], strides = [1, 1]} : vector<64x16xf32> to vector<32x16xf32>
    %c0_4 = arith.constant 0 : index
    %c0_5 = arith.constant 0 : index
    %5 = vector.load %arg3[%c0_4, %c0_5] : memref<32x1xf32, #tpu.memory_space<vmem>>, vector<32x1xf32>
    %6 = vector.broadcast %5 : vector<32x1xf32> to vector<32x16xf32>
    %7 = arith.addf %4, %6 : vector<32x16xf32>
    %8 = math.tanh %7 : vector<32x16xf32>
    %9 = vector.extract_strided_slice %3 {offsets = [32, 0], sizes = [32, 16], strides = [1, 1]} : vector<64x16xf32> to vector<32x16xf32>
    %c0_6 = arith.constant 0 : index
    %c0_7 = arith.constant 0 : index
    %10 = vector.load %arg4[%c0_6, %c0_7] : memref<32x1xf32, #tpu.memory_space<vmem>>, vector<32x1xf32>
    %11 = vector.broadcast %10 : vector<32x1xf32> to vector<32x16xf32>
    %12 = arith.addf %9, %11 : vector<32x16xf32>
    %13 = arith.negf %12 : vector<32x16xf32>
    %14 = math.exp %13 : vector<32x16xf32>
    %cst_8 = arith.constant 1.000000e+00 : f32
    %15 = vector.broadcast %cst_8 : f32 to vector<32x16xf32>
    %16 = arith.addf %15, %14 : vector<32x16xf32>
    %17 = arith.divf %15, %16 : vector<32x16xf32>
    %18 = arith.mulf %8, %17 : vector<32x16xf32>
    %c0_9 = arith.constant 0 : index
    %c0_10 = arith.constant 0 : index
    %19 = vector.load %arg5[%c0_9, %c0_10] : memref<32x1xf32, #tpu.memory_space<vmem>>, vector<32x1xf32>
    %20 = vector.broadcast %19 : vector<32x1xf32> to vector<32x16xf32>
    %21 = arith.mulf %20, %18 : vector<32x16xf32>
    %cst_11 = arith.constant dense<0.000000e+00> : vector<16xf32>
    %22 = vector.multi_reduction <add>, %21, %cst_11 [0] : vector<32x16xf32> to vector<16xf32>
    %23 = vector.shape_cast %22 : vector<16xf32> to vector<1x16xf32>
    %c0_12 = arith.constant 0 : index
    %c0_13 = arith.constant 0 : index
    %24 = vector.load %arg6[%c0_12, %c0_13] : memref<1x1xf32, #tpu.memory_space<vmem>>, vector<1x1xf32>
    %25 = vector.broadcast %24 : vector<1x1xf32> to vector<1x16xf32>
    %26 = arith.addf %23, %25 : vector<1x16xf32>
    %27 = tpu.iota {dimensions = array<i32: 1>} : vector<1x16xi32>
    %c16_i32 = arith.constant 16 : i32
    %28 = vector.broadcast %c16_i32 : i32 to vector<1x16xi32>
    %29 = arith.cmpi slt, %27, %28 : vector<1x16xi32>
    %cst_14 = arith.constant -1.000000e+30 : f32
    %30 = vector.broadcast %cst_14 : f32 to vector<1x16xf32>
    %31 = arith.select %29, %26, %30 : vector<1x16xi1>, vector<1x16xf32>
    %cst_15 = arith.constant dense<0xFF800000> : vector<1xf32>
    %32 = vector.multi_reduction <maximumf>, %31, %cst_15 [1] : vector<1x16xf32> to vector<1xf32>
    %33 = vector.shape_cast %32 : vector<1xf32> to vector<1x1xf32>
    %34 = vector.broadcast %33 : vector<1x1xf32> to vector<1x16xf32>
    %35 = arith.subf %31, %34 : vector<1x16xf32>
    %36 = math.exp %35 : vector<1x16xf32>
    %cst_16 = arith.constant dense<0.000000e+00> : vector<1xf32>
    %37 = vector.multi_reduction <add>, %36, %cst_16 [1] : vector<1x16xf32> to vector<1xf32>
    %38 = vector.shape_cast %37 : vector<1xf32> to vector<1x1xf32>
    %39 = vector.broadcast %38 : vector<1x1xf32> to vector<1x16xf32>
    %40 = arith.divf %36, %39 : vector<1x16xf32>
    %c0_17 = arith.constant 0 : index
    %c0_18 = arith.constant 0 : index
    %c0_19 = arith.constant 0 : index
    %41 = vector.load %arg8[%c0_17, %c0_18, %c0_19] : memref<1x1x16xf32, #tpu.memory_space<vmem>>, vector<1x1x16xf32>
    %42 = vector.shape_cast %41 : vector<1x1x16xf32> to vector<1x16xf32>
    %43 = vector.shape_cast %40 : vector<1x16xf32> to vector<1x1x16xf32>
    tpu.vector_store %arg8[%c0_17, %c0_18, %c0_19], %43 {strides = array<i32>} : memref<1x1x16xf32, #tpu.memory_space<vmem>>, vector<1x1x16xf32>,
    %44 = vector.broadcast %40 : vector<1x16xf32> to vector<32x16xf32>
    %45 = arith.mulf %1, %44 : vector<32x16xf32>
    %c0_20 = arith.constant 0 : index
    %c0_21 = arith.constant 0 : index
    %c0_22 = arith.constant 0 : index
    %46 = vector.load %arg7[%c0_20, %c0_21, %c0_22] : memref<1x32x16xf32, #tpu.memory_space<vmem>>, vector<1x32x16xf32>
    %47 = vector.shape_cast %46 : vector<1x32x16xf32> to vector<32x16xf32>
    %48 = vector.shape_cast %45 : vector<32x16xf32> to vector<1x32x16xf32>
    tpu.vector_store %arg7[%c0_20, %c0_21, %c0_22], %48 {strides = array<i32>} : memref<1x32x16xf32, #tpu.memory_space<vmem>>, vector<1x32x16xf32>,
    return
  }
  func.func @transform_0(%arg0: i32) -> (i32, i32, i32) {
    %c0_i32 = arith.constant 0 : i32
    %c0_i32_0 = arith.constant 0 : i32
    %c0_i32_1 = arith.constant 0 : i32
    return %arg0, %c0_i32, %c0_i32_0 : i32, i32, i32
  }
  func.func @transform_1(%arg0: i32) -> (i32, i32) {
    %c0_i32 = arith.constant 0 : i32
    %c0_i32_0 = arith.constant 0 : i32
    %c0_i32_1 = arith.constant 0 : i32
    return %c0_i32, %c0_i32_0 : i32, i32
  }
  func.func @transform_2(%arg0: i32) -> (i32, i32) {
    %c0_i32 = arith.constant 0 : i32
    %c0_i32_0 = arith.constant 0 : i32
    %c0_i32_1 = arith.constant 0 : i32
    return %c0_i32, %c0_i32_0 : i32, i32
  }
  func.func @transform_3(%arg0: i32) -> (i32, i32) {
    %c0_i32 = arith.constant 0 : i32
    %c0_i32_0 = arith.constant 0 : i32
    %c0_i32_1 = arith.constant 0 : i32
    return %c0_i32, %c0_i32_0 : i32, i32
  }
  func.func @transform_4(%arg0: i32) -> (i32, i32) {
    %c0_i32 = arith.constant 0 : i32
    %c0_i32_0 = arith.constant 0 : i32
    %c0_i32_1 = arith.constant 0 : i32
    return %c0_i32, %c0_i32_0 : i32, i32
  }
  func.func @transform_5(%arg0: i32) -> (i32, i32) {
    %c0_i32 = arith.constant 0 : i32
    %c0_i32_0 = arith.constant 0 : i32
    %c0_i32_1 = arith.constant 0 : i32
    return %c0_i32, %c0_i32_0 : i32, i32
  }
  func.func @transform_6(%arg0: i32) -> (i32, i32, i32) {
    %c0_i32 = arith.constant 0 : i32
    %c0_i32_0 = arith.constant 0 : i32
    %c0_i32_1 = arith.constant 0 : i32
    return %arg0, %c0_i32, %c0_i32_0 : i32, i32, i32
  }
  func.func @transform_7(%arg0: i32) -> (i32, i32, i32) {
    %c0_i32 = arith.constant 0 : i32
    %c0_i32_0 = arith.constant 0 : i32
    %c0_i32_1 = arith.constant 0 : i32
    return %arg0, %c0_i32, %c0_i32_0 : i32, i32, i32
  }
}

</mosaic_0001>

<llo_original>
// kernel: tpu_custom_call.1
$region0: #{tpu_custom_call.1}
  #allocation0 [shape = 'u32[]', space=smem, size = 0x4, offset = 0x4, fixed_abs, tag = 'smem constant byte address 0x4 - core index']
  #allocation1 [shape = 'u32[144,128]{1,0:T(1,128)}', space=vmem, size = 0x12000, scoped, tag = 'internal scratch']
  #allocation2 [shape = 'f32[1,1]{1,0:T(1,128)S(1)}', space=vmem, size = 0x200, scoped, tag = 'scoped memory for tpu_custom_call.1']
  %s0 = inlined_call_operand.vmem [shape: f32[2,32,16], index: 0, kind: input, shape index: {}]
  %s1 = inlined_call_operand.vmem [shape: f32[64,32], index: 1, kind: input, shape index: {}]
  %s2 = inlined_call_operand.vmem [shape: f32[32,1], index: 2, kind: input, shape index: {}]
  %s3 = inlined_call_operand.vmem [shape: f32[32,1], index: 3, kind: input, shape index: {}]
  %s4 = inlined_call_operand.vmem [shape: f32[32,1], index: 4, kind: input, shape index: {}]
  %s5 = inlined_call_operand.<no memory space> [shape: f32[1,1], index: 5, kind: input, shape index: {}]
  %s6 = inlined_call_operand.vmem [shape: f32[2,32,16], index: 6, kind: output, shape index: {0}]
  %s7 = inlined_call_operand.hbm [shape: f32[2,1,16], index: 7, kind: output, shape index: {1}]
  %8 = xla_tuple %s6, %s7
  %s9 = sld [smem:[#allocation0]]
  $region65: #{tpu_custom_call.1} parent=0
    _
  %s11 = ssub.s32 1, %s9
  %s12 = scalar_select 0, %s11, %s9
  %v13 = vstv %s5
  %14 = vst [vmem:[#allocation2] sm:$0x1] %v13
  $region1: #{tpu_custom_call.1} parent=0
    #allocation3 [shape = 'u8[1024]{0}', space=vmem, size = 0x400, scoped, tag = 'output window, operand 1']
    #allocation4 [shape = 's32[2]{0}', space=sflag, size = 0x8, scoped, tag = 'scoped memory for tpu_custom_call.1']
    %15 = vsyncpa [#allocation4], 0
    %s16 = scalar_lea.sflag [#allocation4], 1
    %17 = vsyncpa %s16, 0
    loop: start=0, step=1, limit=4
    $region2: #{tpu_custom_call.1} parent=1 // loop_pre_header
      _
    $region3: #{tpu_custom_call.1} parent=1 // loop_header
      %s19 = sphi 0, %s23
      %p20 = scmp.ge.s32.totalorder %s19, 4
      %s29 = sphi 0, %s31
      %s32 = sphi 0, %s29
      %s33 = sphi 0, %s32
      %s49 = sphi 0, %s33
      %s53 = sphi 0, %s53
      %s55 = sphi 0, %s53
      %s56 = sphi 0, %s55
      %s70 = sphi 0, %s56
      %s74 = sphi 0, %s74
      %s76 = sphi 0, %s74
      %s77 = sphi 0, %s76
      %s91 = sphi 0, %s77
      %s95 = sphi 0, %s95
      %s97 = sphi 0, %s95
      %s98 = sphi 0, %s97
      %s112 = sphi 0, %s98
      %s116 = sphi 0, %s116
      %s118 = sphi 0, %s116
      %s119 = sphi 0, %s118
      %s133 = sphi 0, %s119
      %s137 = sphi 0, %s137
      %s139 = sphi 0, %s137
      %s140 = sphi 0, %s139
      %s154 = sphi 0, %s140
      %s160 = sphi 0, %s162
      %s163 = sphi 0, %s160
      %s164 = sphi 0, %s163
      %s180 = sphi 0, %s164
      %s186 = sphi 0, %s188
      %s189 = sphi 0, %s186
      %s190 = sphi 0, %s189
      %s206 = sphi 0, %s190
    $region4: #{tpu_custom_call.1} parent=1 // loop_header_branch
      %22 = sbr.rel (%p20) target = $region8
    $region5: #{tpu_custom_call.1} parent=1 // loop_body
      %s24 = ssub.s32 %s19, 1
      %s25 = ssub.s32 %s19, 2
      %s26 = sadd.s32 %s19, 1
      %s27 = ssub.s32 %s19, %s26
      %p28 = scmp.eq.s32.totalorder %s27, 0
      %s30 = sadd.s32 %s29, 1
      %s31 = scalar_select %p28, %s29, %s30
      %p34 = pneg %p28
      %p35 = scmp.eq.s32.totalorder %s19, 1
      %p36 = por %p34, %p35
      %p37 = scmp.ne.s32.totalorder %s29, %s32
      %p38 = scmp.eq.s32.totalorder %s19, 0
      %p39 = por %p37, %p38
      %p40 = scmp.ne.s32.totalorder %s29, %s32
      %p41 = scmp.eq.s32.totalorder %s24, 1
      %p42 = por %p40, %p41
      %p43 = scmp.ne.s32.totalorder %s32, %s33
      %p44 = scmp.eq.s32.totalorder %s24, 0
      %p45 = por %p43, %p44
      %p46 = scmp.ne.s32.totalorder %s32, %s33
      %p47 = scmp.eq.s32.totalorder %s25, 1
      %p48 = por %p46, %p47
      %p50 = scmp.ne.s32.totalorder %s33, %s49
      %p51 = scmp.eq.s32.totalorder %s25, 0
      %p52 = por %p50, %p51
      %s54 = sadd.s32 %s53, 1
      %p57 = scmp.eq.s32.totalorder %s19, 1
      %p58 = scmp.ne.s32.totalorder %s53, %s55
      %p59 = scmp.eq.s32.totalorder %s19, 0
      %p60 = por %p58, %p59
      %p61 = scmp.ne.s32.totalorder %s53, %s55
      %p62 = scmp.eq.s32.totalorder %s24, 1
      %p63 = por %p61, %p62
      %p64 = scmp.ne.s32.totalorder %s55, %s56
      %p65 = scmp.eq.s32.totalorder %s24, 0
      %p66 = por %p64, %p65
      %p67 = scmp.ne.s32.totalorder %s55, %s56
      %p68 = scmp.eq.s32.totalorder %s25, 1
      %p69 = por %p67, %p68
      %p71 = scmp.ne.s32.totalorder %s56, %s70
      %p72 = scmp.eq.s32.totalorder %s25, 0
      %p73 = por %p71, %p72
      %s75 = sadd.s32 %s74, 1
      %p78 = scmp.eq.s32.totalorder %s19, 1
      %p79 = scmp.ne.s32.totalorder %s74, %s76
      %p80 = scmp.eq.s32.totalorder %s19, 0
      %p81 = por %p79, %p80
      %p82 = scmp.ne.s32.totalorder %s74, %s76
      %p83 = scmp.eq.s32.totalorder %s24, 1
      %p84 = por %p82, %p83
      %p85 = scmp.ne.s32.totalorder %s76, %s77
      %p86 = scmp.eq.s32.totalorder %s24, 0
      %p87 = por %p85, %p86
      %p88 = scmp.ne.s32.totalorder %s76, %s77
      %p89 = scmp.eq.s32.totalorder %s25, 1
      %p90 = por %p88, %p89
      %p92 = scmp.ne.s32.totalorder %s77, %s91
      %p93 = scmp.eq.s32.totalorder %s25, 0
      %p94 = por %p92, %p93
      %s96 = sadd.s32 %s95, 1
      %p99 = scmp.eq.s32.totalorder %s19, 1
      %p100 = scmp.ne.s32.totalorder %s95, %s97
      %p101 = scmp.eq.s32.totalorder %s19, 0
      %p102 = por %p100, %p101
      %p103 = scmp.ne.s32.totalorder %s95, %s97
      %p104 = scmp.eq.s32.totalorder %s24, 1
      %p105 = por %p103, %p104
      %p106 = scmp.ne.s32.totalorder %s97, %s98
      %p107 = scmp.eq.s32.totalorder %s24, 0
      %p108 = por %p106, %p107
      %p109 = scmp.ne.s32.totalorder %s97, %s98
      %p110 = scmp.eq.s32.totalorder %s25, 1
      %p111 = por %p109, %p110
      %p113 = scmp.ne.s32.totalorder %s98, %s112
      %p114 = scmp.eq.s32.totalorder %s25, 0
      %p115 = por %p113, %p114
      %s117 = sadd.s32 %s116, 1
      %p120 = scmp.eq.s32.totalorder %s19, 1
      %p121 = scmp.ne.s32.totalorder %s116, %s118
      %p122 = scmp.eq.s32.totalorder %s19, 0
      %p123 = por %p121, %p122
      %p124 = scmp.ne.s32.totalorder %s116, %s118
      %p125 = scmp.eq.s32.totalorder %s24, 1
      %p126 = por %p124, %p125
      %p127 = scmp.ne.s32.totalorder %s118, %s119
      %p128 = scmp.eq.s32.totalorder %s24, 0
      %p129 = por %p127, %p128
      %p130 = scmp.ne.s32.totalorder %s118, %s119
      %p131 = scmp.eq.s32.totalorder %s25, 1
      %p132 = por %p130, %p131
      %p134 = scmp.ne.s32.totalorder %s119, %s133
      %p135 = scmp.eq.s32.totalorder %s25, 0
      %p136 = por %p134, %p135
      %s138 = sadd.s32 %s137, 1
      %p141 = scmp.eq.s32.totalorder %s19, 1
      %p142 = scmp.ne.s32.totalorder %s137, %s139
      %p143 = scmp.eq.s32.totalorder %s19, 0
      %p144 = por %p142, %p143
      %p145 = scmp.ne.s32.totalorder %s137, %s139
      %p146 = scmp.eq.s32.totalorder %s24, 1
      %p147 = por %p145, %p146
      %p148 = scmp.ne.s32.totalorder %s139, %s140
      %p149 = scmp.eq.s32.totalorder %s24, 0
      %p150 = por %p148, %p149
      %p151 = scmp.ne.s32.totalorder %s139, %s140
      %p152 = scmp.eq.s32.totalorder %s25, 1
      %p153 = por %p151, %p152
      %p155 = scmp.ne.s32.totalorder %s140, %s154
      %p156 = scmp.eq.s32.totalorder %s25, 0
      %p157 = por %p155, %p156
      %s158 = ssub.s32 %s19, %s26
      %p159 = scmp.eq.s32.totalorder %s158, 0
      %s161 = sadd.s32 %s160, 1
      %s162 = scalar_select %p159, %s160, %s161
      %p165 = pneg %p159
      %p166 = scmp.eq.s32.totalorder %s19, 1
      %p167 = por %p165, %p166
      %p168 = scmp.ne.s32.totalorder %s160, %s163
      %p169 = scmp.eq.s32.totalorder %s19, 0
      %p170 = por %p168, %p169
      %p171 = scmp.ne.s32.totalorder %s160, %s163
      %p172 = scmp.eq.s32.totalorder %s24, 1
      %p173 = por %p171, %p172
      %p174 = scmp.ne.s32.totalorder %s163, %s164
      %p175 = scmp.eq.s32.totalorder %s24, 0
      %p176 = por %p174, %p175
      %p177 = scmp.ne.s32.totalorder %s163, %s164
      %p178 = scmp.eq.s32.totalorder %s25, 1
      %p179 = por %p177, %p178
      %p181 = scmp.ne.s32.totalorder %s164, %s180
      %p182 = scmp.eq.s32.totalorder %s25, 0
      %p183 = por %p181, %p182
      %s184 = ssub.s32 %s19, %s26
      %p185 = scmp.eq.s32.totalorder %s184, 0
      %s187 = sadd.s32 %s186, 1
      %s188 = scalar_select %p185, %s186, %s187
      %p191 = pneg %p185
      %p192 = scmp.eq.s32.totalorder %s19, 1
      %p193 = por %p191, %p192
      %p194 = scmp.ne.s32.totalorder %s186, %s189
      %p195 = scmp.eq.s32.totalorder %s19, 0
      %p196 = por %p194, %p195
      %p197 = scmp.ne.s32.totalorder %s186, %s189
      %p198 = scmp.eq.s32.totalorder %s24, 1
      %p199 = por %p197, %p198
      %p200 = scmp.ne.s32.totalorder %s189, %s190
      %p201 = scmp.eq.s32.totalorder %s24, 0
      %p202 = por %p200, %p201
      %p203 = scmp.ne.s32.totalorder %s189, %s190
      %p204 = scmp.eq.s32.totalorder %s25, 1
      %p205 = por %p203, %p204
      %p207 = scmp.ne.s32.totalorder %s190, %s206
      %p208 = scmp.eq.s32.totalorder %s25, 0
      %p209 = por %p207, %p208
      %p210 = scmp.le.s32.totalorder 1, %s19
      %p211 = scmp.lt.s32.totalorder %s19, 3
      %p212 = pnand %p210, %p211
      %p213 = pneg %p212
      // Predicated region
      $region9: #{tpu_custom_call.1} parent=5 // pred_check
        _
      $region10: #{tpu_custom_call.1} parent=5 // pred_check_branch
        %215 = sbr.rel (%p212) target = $region12
      $region11: #{tpu_custom_call.1} parent=5 // pred_region
        %s216 = ssub.s32 %s19, 1
        // Predicated region
        $region13: #{tpu_custom_call.1} parent=11 // pred_check
          %p217 = pneg %p66
        $region14: #{tpu_custom_call.1} parent=11 // pred_check_branch
          %219 = sbr.rel (%p217) target = $region16
        $region15: #{tpu_custom_call.1} parent=11 // pred_region
          _
        $region16: #{tpu_custom_call.1} parent=11 // pred_fallthru
          _
        // Predicated region
        $region17: #{tpu_custom_call.1} parent=11 // pred_check
          %p220 = pneg %p87
        $region18: #{tpu_custom_call.1} parent=11 // pred_check_branch
          %222 = sbr.rel (%p220) target = $region20
        $region19: #{tpu_custom_call.1} parent=11 // pred_region
          _
        $region20: #{tpu_custom_call.1} parent=11 // pred_fallthru
          _
        // Predicated region
        $region21: #{tpu_custom_call.1} parent=11 // pred_check
          %p223 = pneg %p108
        $region22: #{tpu_custom_call.1} parent=11 // pred_check_branch
          %225 = sbr.rel (%p223) target = $region24
        $region23: #{tpu_custom_call.1} parent=11 // pred_region
          _
        $region24: #{tpu_custom_call.1} parent=11 // pred_fallthru
          _
        // Predicated region
        $region25: #{tpu_custom_call.1} parent=11 // pred_check
          %p226 = pneg %p129
        $region26: #{tpu_custom_call.1} parent=11 // pred_check_branch
          %228 = sbr.rel (%p226) target = $region28
        $region27: #{tpu_custom_call.1} parent=11 // pred_region
          _
        $region28: #{tpu_custom_call.1} parent=11 // pred_fallthru
          _
        // Predicated region
        $region29: #{tpu_custom_call.1} parent=11 // pred_check
          %p229 = pneg %p150
        $region30: #{tpu_custom_call.1} parent=11 // pred_check_branch
          %231 = sbr.rel (%p229) target = $region32
        $region31: #{tpu_custom_call.1} parent=11 // pred_region
          _
        $region32: #{tpu_custom_call.1} parent=11 // pred_fallthru
          _
      $region12: #{tpu_custom_call.1} parent=5 // pred_fallthru
        _
      %p232 = scmp.lt.s32.totalorder %s19, 2
      // Predicated region
      $region33: #{tpu_custom_call.1} parent=5 // pred_check
        %p233 = pneg %p232
      $region34: #{tpu_custom_call.1} parent=5 // pred_check_branch
        %235 = sbr.rel (%p233) target = $region36
      $region35: #{tpu_custom_call.1} parent=5 // pred_region
        // Predicated region
        $region37: #{tpu_custom_call.1} parent=35 // pred_check
          %p236 = pneg %p39
        $region38: #{tpu_custom_call.1} parent=35 // pred_check_branch
          %238 = sbr.rel (%p236) target = $region40
        $region39: #{tpu_custom_call.1} parent=35 // pred_region
          %p239 = scmp.lt.s32.totalorder %s19, 1
          %s240 = scalar_select %p239, %s19, 1
          %s241 = smul.addr %s240, 4
          %s242 = smul.addr %s241, 8
          %s243 = scalar_lea.vmem %s0, %s242
        $region40: #{tpu_custom_call.1} parent=35 // pred_fallthru
          _
      $region36: #{tpu_custom_call.1} parent=5 // pred_fallthru
        _
      %p244 = scmp.le.s32.totalorder 1, %s19
      %p245 = scmp.lt.s32.totalorder %s19, 3
      %p246 = pnand %p244, %p245
      %p247 = pneg %p246
      // Predicated region
      $region41: #{tpu_custom_call.1} parent=5 // pred_check
        _
      $region42: #{tpu_custom_call.1} parent=5 // pred_check_branch
        %249 = sbr.rel (%p246) target = $region44
      $region43: #{tpu_custom_call.1} parent=5 // pred_region
        %s250 = ssub.s32 %s19, 1
        %p251 = scmp.lt.s32.totalorder %s24, 1
        %s252 = scalar_select %p251, %s24, 1
        %s253 = smul.addr %s252, 4
        %s254 = smul.addr %s253, 8
        %s255 = scalar_lea.vmem %s0, %s254
        %p256 = pneg %p45
        %p257 = pneg %p42
        %p258 = pneg %p66
        %p259 = pneg %p63
        %p260 = pneg %p87
        %p261 = pneg %p84
        %p262 = pneg %p108
        %p263 = pneg %p105
        %p264 = pneg %p129
        %p265 = pneg %p126
        %p266 = pneg %p150
        %p267 = pneg %p147
        %p268 = pneg %p176
        %p269 = pneg %p173
        %p270 = scmp.lt.s32.totalorder %s24, 1
        %s271 = scalar_select %p270, %s24, 1
        %s272 = smul.addr %s271, 4
        %s273 = smul.addr %s272, 8
        %s274 = scalar_lea.vmem %s6, %s273
        %p275 = pneg %p202
        %p276 = pneg %p199
        %s277 = sand.u32 %s189, 1
        %s278 = scalar_lea.sflag [#allocation4], %s277
        %s279 = sand.u32 %s189, 1
        %s280 = scalar_lea.vmem [#allocation3], %s279
        %p281 = scmp.lt.s32.totalorder %s24, 1
        %s282 = scalar_select %p281, %s24, 1
        %s283 = smul.addr %s282, 4
        %s284 = smul.addr %s283, 8
        %s285 = scalar_lea.vmem %s0, %s284
        %p286 = scmp.lt.s32.totalorder %s24, 1
        %s287 = scalar_select %p286, %s24, 1
        %s288 = smul.addr %s287, 4
        %s289 = smul.addr %s288, 8
        %s290 = scalar_lea.vmem %s6, %s289
        %v291 = vld [vmem:[%s285] sm:$0xff]
        %v292 = vld [vmem:[%s285 + $0x8] sm:$0xff]
        %v293 = vld [vmem:[%s285 + $0x10] sm:$0xff]
        %v294 = vld [vmem:[%s285 + $0x18] sm:$0xff]
        %v295 = vld [vmem:[%s1] sm:$0xff]
        %v296 = vld [vmem:[%s1 + $0x8] sm:$0xff]
        %v297 = vld [vmem:[%s1 + $0x10] sm:$0xff]
        %v298 = vld [vmem:[%s1 + $0x18] sm:$0xff]
        %v299 = vld [vmem:[%s1 + $0x20] sm:$0xff]
        %v300 = vld [vmem:[%s1 + $0x28] sm:$0xff]
        %v301 = vld [vmem:[%s1 + $0x30] sm:$0xff]
        %v302 = vld [vmem:[%s1 + $0x38] sm:$0xff]
        %vm303 = vcmask 261120
        %v305 = vsel %vm303, %v295, 0
        %v308 = vsel %vm303, %v296, 0
        %v311 = vsel %vm303, %v297, 0
        %v314 = vsel %vm303, %v298, 0
        %v317 = vsel %vm303, %v299, 0
        %v320 = vsel %vm303, %v300, 0
        %v323 = vsel %vm303, %v301, 0
        %v326 = vsel %vm303, %v302, 0
        %328 = vmatprep.subr.mxu0 0.0
        %329 = vmatpush1.msra.mxu0 %v291
        %330 = vmatprep.subr.mxu0 0.0
        %331 = vmatpush1.msra.mxu0 %v292
        %332 = vmatprep.subr.mxu0 0.0
        %333 = vmatpush1.msra.mxu0 %v293
        %334 = vmatprep.subr.mxu0 0.0
        %335 = vmatpush1.msra.mxu0 %v294
        %336 = vmatprep.subr.mxu0 0.0
        %337 = vmatpush1.msra.mxu0 0.0
        %338 = vmatprep.subr.mxu0 0.0
        %339 = vmatpush1.msra.mxu0 0.0
        %340 = vmatprep.subr.mxu0 0.0
        %341 = vmatpush1.msra.mxu0 0.0
        %342 = vmatprep.subr.mxu0 0.0
        %343 = vmatpush1.msra.mxu0 0.0
        %344 = vmatprep.subr.mxu0 0.0
        %345 = vmatpush1.msra.mxu0 0.0
        %346 = vmatprep.subr.mxu0 0.0
        %347 = vmatpush1.msra.mxu0 0.0
        %348 = vmatprep.subr.mxu0 0.0
        %349 = vmatpush1.msra.mxu0 0.0
        %350 = vmatprep.subr.mxu0 0.0
        %351 = vmatpush1.msra.mxu0 0.0
        %352 = vmatprep.subr.mxu0 0.0
        %353 = vmatpush1.msra.mxu0 0.0
        %354 = vmatprep.subr.mxu0 0.0
        %355 = vmatpush1.msra.mxu0 0.0
        %356 = vmatprep.subr.mxu0 0.0
        %357 = vmatpush1.msra.mxu0 0.0
        %358 = vmatprep.subr.mxu0 0.0
        %359 = vmatpush1.msra.mxu0 0.0
        %360 = vmatprep.subr.mxu0 0.0
        %361 = vmatpush1.msra.mxu0 0.0
        %362 = vmatprep.subr.mxu0 0.0
        %363 = vmatpush1.msra.mxu0 0.0
        %364 = vmatprep.subr.mxu0 0.0
        %365 = vmatpush1.msra.mxu0 0.0
        %366 = vmatprep.subr.mxu0 0.0
        %367 = vmatpush1.msra.mxu0 0.0
        %368 = vmatprep.subr.mxu0 0.0
        %369 = vmatpush1.msra.mxu0 0.0
        %370 = vmatprep.subr.mxu0 0.0
        %371 = vmatpush1.msra.mxu0 0.0
        %372 = vmatprep.subr.mxu0 0.0
        %373 = vmatpush1.msra.mxu0 0.0
        %374 = vmatprep.subr.mxu0 0.0
        %375 = vmatpush1.msra.mxu0 0.0
        %376 = vmatprep.subr.mxu0 0.0
        %377 = vmatpush1.msra.mxu0 0.0
        %378 = vmatprep.subr.mxu0 0.0
        %379 = vmatpush1.msra.mxu0 0.0
        %380 = vmatprep.subr.mxu0 0.0
        %381 = vmatpush1.msra.mxu0 0.0
        %382 = vmatprep.subr.mxu0 0.0
        %383 = vmatpush1.msra.mxu0 0.0
        %384 = vmatprep.subr.mxu0 0.0
        %385 = vmatpush1.msra.mxu0 0.0
        %386 = vmatprep.subr.mxu0 0.0
        %387 = vmatpush1.msra.mxu0 0.0
        %388 = vmatprep.subr.mxu0 0.0
        %389 = vmatpush1.msra.mxu0 0.0
        %390 = vmatprep.subr.mxu0 0.0
        %391 = vmatpush1.msra.mxu0 0.0
        %392 = vmatprep.mubr.f32.mxu0 0.0
        %393 = vmatmul.mubr.f32.gmra.mrb[0].mxu0 %v305
        %v394 = vpop.f32.mrb[0].mxu0
        %v395 = vadd.f32 0.0, %v394
        %v396 = vpop.f32.mrb[0].mxu0
        %397 = vmatprep.mubr.f32.mxu0 0.0
        %398 = vmatmul.mubr.f32.gmra.mrb[0].mxu0 %v308
        %v399 = vpop.f32.mrb[0].mxu0
        %v400 = vadd.f32 0.0, %v399
        %v401 = vpop.f32.mrb[0].mxu0
        %402 = vmatprep.mubr.f32.mxu0 0.0
        %403 = vmatmul.mubr.f32.gmra.mrb[0].mxu0 %v311
        %v404 = vpop.f32.mrb[0].mxu0
        %v405 = vadd.f32 0.0, %v404
        %v406 = vpop.f32.mrb[0].mxu0
        %407 = vmatprep.mubr.f32.mxu0 0.0
        %408 = vmatmul.mubr.f32.gmra.mrb[0].mxu0 %v314
        %v409 = vpop.f32.mrb[0].mxu0
        %v410 = vadd.f32 0.0, %v409
        %v411 = vpop.f32.mrb[0].mxu0
        %412 = vmatprep.mubr.f32.mxu0 0.0
        %413 = vmatmul.mubr.f32.gmra.mrb[0].mxu0 %v317
        %v414 = vpop.f32.mrb[0].mxu0
        %v415 = vadd.f32 0.0, %v414
        %v416 = vpop.f32.mrb[0].mxu0
        %417 = vmatprep.mubr.f32.mxu0 0.0
        %418 = vmatmul.mubr.f32.gmra.mrb[0].mxu0 %v320
        %v419 = vpop.f32.mrb[0].mxu0
        %v420 = vadd.f32 0.0, %v419
        %v421 = vpop.f32.mrb[0].mxu0
        %422 = vmatprep.mubr.f32.mxu0 0.0
        %423 = vmatmul.mubr.f32.gmra.mrb[0].mxu0 %v323
        %v424 = vpop.f32.mrb[0].mxu0
        %v425 = vadd.f32 0.0, %v424
        %v426 = vpop.f32.mrb[0].mxu0
        %427 = vmatprep.mubr.f32.mxu0 0.0
        %428 = vmatmul.mubr.f32.gmra.mrb[0].mxu0 %v326
        %v429 = vpop.f32.mrb[0].mxu0
        %v430 = vadd.f32 0.0, %v429
        %v431 = vpop.f32.mrb[0].mxu0
        %432 = vdwg.mxu0
        %v433 = vld [vmem:[%s2] sm:$0xff]
        %v434 = vld [vmem:[%s2 + $0x8] sm:$0xff]
        %v435 = vld [vmem:[%s2 + $0x10] sm:$0xff]
        %v436 = vld [vmem:[%s2 + $0x18] sm:$0xff]
        %438 = vset.pattern.permute.xlu0 0
        %439 = vperm.xlu0 %438, %v433
        %v440 = vpop.permute.xlu0 %439
        %443 = vset.pattern.permute.xlu0 0
        %444 = vperm.xlu0 %443, %v434
        %v445 = vpop.permute.xlu0 %444
        %448 = vset.pattern.permute.xlu0 0
        %449 = vperm.xlu0 %448, %v435
        %v450 = vpop.permute.xlu0 %449
        %453 = vset.pattern.permute.xlu0 0
        %454 = vperm.xlu0 %453, %v436
        %v455 = vpop.permute.xlu0 %454
        %v457 = vadd.f32 %v395, %v440
        %v458 = vadd.f32 %v400, %v445
        %v459 = vadd.f32 %v405, %v450
        %v460 = vadd.f32 %v410, %v455
        %v461 = vtanh.pop %v457
        %v462 = vtanh.pop %v458
        %v463 = vtanh.pop %v459
        %v464 = vtanh.pop %v460
        %v465 = vld [vmem:[%s3] sm:$0xff]
        %v466 = vld [vmem:[%s3 + $0x8] sm:$0xff]
        %v467 = vld [vmem:[%s3 + $0x10] sm:$0xff]
        %v468 = vld [vmem:[%s3 + $0x18] sm:$0xff]
        %470 = vset.pattern.permute.xlu0 0
        %471 = vperm.xlu0 %470, %v465
        %v472 = vpop.permute.xlu0 %471
        %475 = vset.pattern.permute.xlu0 0
        %476 = vperm.xlu0 %475, %v466
        %v477 = vpop.permute.xlu0 %476
        %480 = vset.pattern.permute.xlu0 0
        %481 = vperm.xlu0 %480, %v467
        %v482 = vpop.permute.xlu0 %481
        %485 = vset.pattern.permute.xlu0 0
        %486 = vperm.xlu0 %485, %v468
        %v487 = vpop.permute.xlu0 %486
        %v489 = vadd.f32 %v415, %v472
        %v490 = vadd.f32 %v420, %v477
        %v491 = vadd.f32 %v425, %v482
        %v492 = vadd.f32 %v430, %v487
        %v493 = vxor.u32 %v489, 2147483648
        %v494 = vxor.u32 %v490, 2147483648
        %v495 = vxor.u32 %v491, 2147483648
        %v496 = vxor.u32 %v492, 2147483648
        %v497 = vmul.f32 %v493, 1.442695
        %v498 = vpow.pop %v497
        %v499 = vmul.f32 %v494, 1.442695
        %v500 = vpow.pop %v499
        %v501 = vmul.f32 %v495, 1.442695
        %v502 = vpow.pop %v501
        %v503 = vmul.f32 %v496, 1.442695
        %v504 = vpow.pop %v503
        %v505 = vadd.f32 %v498, 1.0
        %v506 = vadd.f32 %v500, 1.0
        %v507 = vadd.f32 %v502, 1.0
        %v508 = vadd.f32 %v504, 1.0
        %v509 = vrcp.pop %v505
        %v510 = vmul.f32 1.0, %v509
        %v511 = vrcp.pop %v506
        %v512 = vmul.f32 1.0, %v511
        %v513 = vrcp.pop %v507
        %v514 = vmul.f32 1.0, %v513
        %v515 = vrcp.pop %v508
        %v516 = vmul.f32 1.0, %v515
        %v517 = vmul.f32 %v461, %v510
        %v518 = vmul.f32 %v462, %v512
        %v519 = vmul.f32 %v463, %v514
        %v520 = vmul.f32 %v464, %v516
        %v521 = vld [vmem:[%s4] sm:$0xff]
        %v522 = vld [vmem:[%s4 + $0x8] sm:$0xff]
        %v523 = vld [vmem:[%s4 + $0x10] sm:$0xff]
        %v524 = vld [vmem:[%s4 + $0x18] sm:$0xff]
        %526 = vset.pattern.permute.xlu0 0
        %527 = vperm.xlu0 %526, %v521
        %v528 = vpop.permute.xlu0 %527
        %531 = vset.pattern.permute.xlu0 0
        %532 = vperm.xlu0 %531, %v522
        %v533 = vpop.permute.xlu0 %532
        %536 = vset.pattern.permute.xlu0 0
        %537 = vperm.xlu0 %536, %v523
        %v538 = vpop.permute.xlu0 %537
        %541 = vset.pattern.permute.xlu0 0
        %542 = vperm.xlu0 %541, %v524
        %v543 = vpop.permute.xlu0 %542
        %v545 = vmul.f32 %v528, %v517
        %v546 = vmul.f32 %v533, %v518
        %v547 = vmul.f32 %v538, %v519
        %v548 = vmul.f32 %v543, %v520
        %vm549 = vcmask 130048
        %v550 = vsel %vm549, %v545, 0.0
        %v551 = vsel %vm549, %v546, 0.0
        %v552 = vadd.f32 %v550, %v551
        %v553 = vsel %vm549, %v547, 0.0
        %v554 = vadd.f32 %v552, %v553
        %v555 = vsel %vm549, %v548, 0.0
        %v556 = vadd.f32 %v554, %v555
        %v557 = vrot.slane %v556, 4
        %v558 = vadd.f32 %v556, %v557
        %v559 = vrot.slane %v558, 2
        %v560 = vadd.f32 %v558, %v559
        %v561 = vrot.slane %v560, 1
        %v562 = vadd.f32 %v560, %v561
        %v563 = vld [vmem:[#allocation2] sm:$0x1]
        %565 = vset.pattern.permute.xlu0 0
        %566 = vperm.xlu0 %565, %v563
        %v567 = vpop.permute.xlu0 %566
        %v569 = vlaneseq
        %v570 = vshrl.u32 %v569, 7
        %v571 = vsub.s32 0, %v570
        %v572 = vrot.slane %v567, %v571
        %v573 = vadd.f32 %v562, %v572
        %v574 = vlaneseq
        %v575 = vand.u32 %v574, 127
        %vm576 = vcmp.lt.s32.totalorder %v575, 16
        %v577 = vsel %vm576, %v573, -1e+30
        %v578 = vsel %vm549, %v577, -inf
        %579 = vmax.xlane.f32.xlu0 %v578
        %v580 = vpop.xlane.xlu0 %579
        %v581 = vsub.f32 %v577, %v580
        %v582 = vmul.f32 %v581, 1.442695
        %v583 = vpow.pop %v582
        %v584 = vsel %vm549, %v583, 0.0
        %585 = vadd.xlane.f32.xlu0 %v584
        %v586 = vpop.xlane.xlu0 %585
        %v587 = vrcp.pop %v586
        %v588 = vmul.f32 %v583, %v587
        %vm589 = vcmask 122880
        %590 = vst.msk [vmem:[%s280] sm:$0x1] %vm589, %v588
        %v591 = vmul.f32 %v291, %v588
        %v592 = vmul.f32 %v292, %v588
        %v593 = vmul.f32 %v293, %v588
        %v594 = vmul.f32 %v294, %v588
        %595 = vst.msk [vmem:[%s290] sm:$0xff] %vm549, %v591
        %596 = vst.msk [vmem:[%s290 + $0x8] sm:$0xff] %vm549, %v592
        %597 = vst.msk [vmem:[%s290 + $0x10] sm:$0xff] %vm549, %v593
        %598 = vst.msk [vmem:[%s290 + $0x18] sm:$0xff] %vm549, %v594
        %p599 = scmp.lt.s32.totalorder %s24, 1
        %s600 = scalar_select %p599, %s24, 1
        %s601 = smul.addr %s600, 4
        %s602 = smul.addr %s601, 8
        %s603 = scalar_lea.vmem %s6, %s602
        %s604 = sand.u32 %s189, 1
        %s605 = scalar_lea.sflag [#allocation4], %s604
        %s606 = sand.u32 %s189, 1
        %s607 = scalar_lea.vmem [#allocation3], %s606
        // Predicated region
        $region45: #{tpu_custom_call.1} parent=43 // pred_check
          %p608 = pneg %p173
        $region46: #{tpu_custom_call.1} parent=43 // pred_check_branch
          %610 = sbr.rel (%p608) target = $region48
        $region47: #{tpu_custom_call.1} parent=43 // pred_region
          _
        $region48: #{tpu_custom_call.1} parent=43 // pred_fallthru
          _
        // Predicated region
        $region49: #{tpu_custom_call.1} parent=43 // pred_check
          %p611 = pneg %p199
        $region50: #{tpu_custom_call.1} parent=43 // pred_check_branch
          %613 = sbr.rel (%p611) target = $region52
        $region51: #{tpu_custom_call.1} parent=43 // pred_region
          %s615 = ssub.s32 16, 16
          %616 = vsyncadd %s605, %s615
          %s617 = smul.addr %s24, 16
          %s618 = scalar_lea.hbm %s7, %s617
          %s620 = sshll.u32 %s607, 4
          %s621 = int_to_ptr.vmem [resolvable:$true] %s620
          %623 = dma.vmem_to_hbm [thread:$0]  %s621, 16, %s618, %s605
        $region52: #{tpu_custom_call.1} parent=43 // pred_fallthru
          _
      $region44: #{tpu_custom_call.1} parent=5 // pred_fallthru
        _
      %p624 = scmp.le.s32.totalorder 2, %s19
      // Predicated region
      $region53: #{tpu_custom_call.1} parent=5 // pred_check
        %p625 = pneg %p624
      $region54: #{tpu_custom_call.1} parent=5 // pred_check_branch
        %627 = sbr.rel (%p625) target = $region56
      $region55: #{tpu_custom_call.1} parent=5 // pred_region
        %s628 = ssub.s32 %s19, 2
        // Predicated region
        $region57: #{tpu_custom_call.1} parent=55 // pred_check
          %p629 = pneg %p179
        $region58: #{tpu_custom_call.1} parent=55 // pred_check_branch
          %631 = sbr.rel (%p629) target = $region60
        $region59: #{tpu_custom_call.1} parent=55 // pred_region
          %p632 = scmp.lt.s32.totalorder %s25, 1
          %s633 = scalar_select %p632, %s25, 1
          %s634 = smul.addr %s633, 4
          %s635 = smul.addr %s634, 8
          %s636 = scalar_lea.vmem %s6, %s635
        $region60: #{tpu_custom_call.1} parent=55 // pred_fallthru
          _
        // Predicated region
        $region61: #{tpu_custom_call.1} parent=55 // pred_check
          %p637 = pneg %p205
        $region62: #{tpu_custom_call.1} parent=55 // pred_check_branch
          %639 = sbr.rel (%p637) target = $region64
        $region63: #{tpu_custom_call.1} parent=55 // pred_region
          %s640 = sand.u32 %s190, 1
          %s641 = scalar_lea.sflag [#allocation4], %s640
          %s642 = sand.u32 %s190, 1
          %s643 = scalar_lea.vmem [#allocation3], %s642
          %644 = dma.done %s641, 16
        $region64: #{tpu_custom_call.1} parent=55 // pred_fallthru
          _
      $region56: #{tpu_custom_call.1} parent=5 // pred_fallthru
        _
    $region6: #{tpu_custom_call.1} parent=1 // loop_footer
      %s23 = sadd.s32 1, %s19
    $region7: #{tpu_custom_call.1} parent=1 // loop_footer_branch
      %18 = sbr.rel target = $region3
    $region8: #{tpu_custom_call.1} parent=1 // loop_exit
      _
    %645 = vsyncpa [#allocation4], 1
    %s646 = scalar_lea.sflag [#allocation4], 1
    %647 = vsyncpa %s646, 1

</llo_original>
